<compile_context>
chip_gen: v7x
topology: tpu7x:2x2x1
jax: 0.10.0
libtpu: 0.0.40
codegen_flags: <defaults>
</compile_context>

<pallas_src>
import functools

import jax
import jax.numpy as jnp
from jax.experimental import pallas as pl
from jax.experimental.pallas import tpu as pltpu


# ----------------------------------------------------------------------------
# Tunables (generation-safe conservative defaults).
# ----------------------------------------------------------------------------
_VMEM_BUDGET = 16 * 1024 * 1024        # explicit double-buffered tiles budget
_VMEM_LIMIT = 32 * 1024 * 1024         # scoped VMEM limit (<= v7x 64 MiB phys)
_TARGET_STEP_BYTES = 256 * 1024        # aim for >=256 KiB of x per grid step
_BN_MAX = 8                            # cap batch blocking (bounds unrolling)
_TM_MAX = 8192                         # lane-tile upper bound (budget guards it)


def _mxu_cutover_depth():
    """Contraction depth above which the MXU beats the unrolled VPU path."""
    try:
        kind = jax.devices()[0].device_kind.lower()
    except Exception:  # pragma: no cover - defensive
        kind = ""
    # v5e/older MXUs are 128-deep -> earlier cutover; v6e/v7x are 256-wide and
    # f32 is multi-pass, so mid-size contractions stay on the VPU.
    if "v3" in kind or "v4" in kind or "v5" in kind:
        return 32
    return 64


def _largest_divisor_leq(n, cap):
    cap = max(1, min(n, cap))
    for d in range(cap, 0, -1):
        if n % d == 0:
            return d
    return 1


def _round_up(a, b):
    return ((a + b - 1) // b) * b


# ----------------------------------------------------------------------------
# Channel-major kernel: x [BN, C_in, tm] -> y [BN, C_out, tm]   (4D NCHW path)
# ----------------------------------------------------------------------------
def _cm_kernel(x_ref, w_ref, b_ref, o_ref, *, negative_slope, use_mxu):
    # x_ref: (BN, C_in, tm)  w_ref: (C_out, C_in)  b_ref: (C_out, 1)
    # o_ref: (BN, C_out, tm)
    w = w_ref[...]
    b = b_ref[...].astype(jnp.float32)            # (C_out, 1), lane-broadcast
    bn = x_ref.shape[0]
    c_out, c_in = w.shape

    if not use_mxu:
        wf = w.astype(jnp.float32)
        # Hoist the per-column weight slices once per tile (reused across BN).
        w_cols = [wf[:, ci:ci + 1] for ci in range(c_in)]

    for bi in range(bn):                           # short, statically unrolled
        xb = x_ref[bi]                             # (C_in, tm) tile load
        if use_mxu:
            yb = jnp.dot(w, xb, preferred_element_type=jnp.float32)
        else:
            # Small-K contraction: unrolled broadcast-FMAs on the VPU; skips
            # MXU push/pop latency.  Everything stays lane-dense.
            # TODO(synk): stride-0 sublane-broadcast loads
            # (x_ref[bi, pl.ds(ci, c_out, stride=0), :]) would move the
            # broadcast onto the vld slot; kept on the VALU for portability.
            xf = xb.astype(jnp.float32)
            tm = xf.shape[1]
            yb = jnp.zeros((c_out, tm), jnp.float32)
            for ci in range(c_in):
                yb = yb + w_cols[ci] * xf[ci:ci + 1, :]
        yb = yb + b
        # LeakyReLU via max(y, ns*y); valid because 0 <= ns <= 1 (asserted).
        yb = jnp.maximum(yb, negative_slope * yb)
        o_ref[bi] = yb.astype(o_ref.dtype)


def _choose_cm_tiles(N, C_in, C_out, M, itemsize):
    """VMEM-budget- and megacore-aware (BN, tm, grid_m) selection."""
    weight_bytes = C_out * C_in * itemsize        # single-buffered (Buffered(1))
    avail = max(_VMEM_BUDGET - weight_bytes - (1 << 20),
                2 * (C_in + C_out) * 128 * itemsize)
    per_col = 2 * (C_in + C_out) * itemsize       # double-buffered x+out / lane
    tm_budget = max(128, (avail // per_col) // 128 * 128)

    if M >= 128:
        tm = min(_TM_MAX, tm_budget, (M // 128) * 128)
    else:
        # Sub-128 lane axis: whole M in one (masked-store) tile.  Documented
        # fallback; folding N into lanes would need a transpose pass.
        tm = M
    grid_m = pl.cdiv(M, tm)

    # Batch blocking: make each grid step move a few hundred KB.
    per_elem = max(1, C_in * tm * itemsize)
    bn_target = max(1, -(-_TARGET_STEP_BYTES // per_elem))
    bn_budget = max(1, avail // max(1, 2 * (C_in + C_out) * tm * itemsize))
    bn_cap = min(N, _BN_MAX, bn_target, bn_budget)
    if grid_m == 1 and N >= 2:
        # Keep >= 2 grid iterations so both v7x TensorCores get work.
        bn_cap = min(bn_cap, N // 2)
    bn = _largest_divisor_leq(N, bn_cap)

    # N == 1 and a single spatial tile would strand one v7x core: split M.
    if (N // bn) * grid_m == 1 and M >= 256:
        tm = _round_up(-(-M // 2), 128)
        grid_m = pl.cdiv(M, tm)
    return bn, tm, grid_m


def _linear_leakyrelu_cm(x3d, weight, bias, *, negative_slope=0.01):
    """Channel-major Linear + LeakyReLU.

    x3d:    [N, C_in, M]  (M is the lane-dense spatial axis)
    weight: [C_out, C_in] (torch layout, used directly — no transpose)
    bias:   [C_out]
    returns [N, C_out, M]
    """
    assert 0.0 <= negative_slope <= 1.0, "max(y, ns*y) needs 0 <= ns <= 1"
    N, C_in, M = x3d.shape
    C_out = weight.shape[0]
    itemsize = jnp.dtype(x3d.dtype).itemsize

    bn, tm, grid_m = _choose_cm_tiles(N, C_in, C_out, M, itemsize)
    use_mxu = C_in >= _mxu_cutover_depth()

    kernel = functools.partial(_cm_kernel, negative_slope=negative_slope,
                               use_mxu=use_mxu)
    bias2d = bias.reshape(C_out, 1)

    cost = pl.CostEstimate(
        flops=2 * N * M * C_in * C_out + 3 * N * M * C_out,
        transcendentals=0,
        bytes_accessed=(N * M * (C_in + C_out) * itemsize
                        + C_out * C_in * itemsize + C_out * itemsize),
    )

    out = pl.pallas_call(
        kernel,
        out_shape=jax.ShapeDtypeStruct((N, C_out, M), x3d.dtype),
        grid_spec=pltpu.PrefetchScalarGridSpec(
            num_scalar_prefetch=0,
            grid=(N // bn, grid_m),
            in_specs=[
                pl.BlockSpec((bn, C_in, tm), lambda n, m: (n, 0, m)),
                # Loop-invariant blocks: single-buffered (constant index_map).
                pl.BlockSpec((C_out, C_in), lambda n, m: (0, 0),
                             pipeline_mode=pl.Buffered(1)),
                pl.BlockSpec((C_out, 1), lambda n, m: (0, 0),
                             pipeline_mode=pl.Buffered(1)),
            ],
            out_specs=pl.BlockSpec((bn, C_out, tm), lambda n, m: (n, 0, m)),
        ),
        compiler_params=pltpu.CompilerParams(
            dimension_semantics=("parallel", "parallel"),
            vmem_limit_bytes=_VMEM_LIMIT),
        cost_estimate=cost,
    )(x3d, weight, bias2d)
    return out


# ----------------------------------------------------------------------------
# Row-major kernel: x [tr, C_in] -> y [tr, C_out]       (non-4D / generic path)
# No out-of-kernel transposes of the activation tensor.
# ----------------------------------------------------------------------------
def _rm_kernel(x_ref, wt_ref, b_ref, o_ref, *, negative_slope, use_mxu):
    # x_ref: (tr, C_in)  wt_ref: (C_in, C_out)  b_ref: (1, C_out)  o_ref: (tr, C_out)
    x = x_ref[...]
    wt = wt_ref[...]
    b = b_ref[...].astype(jnp.float32)
    if use_mxu:
        y = jnp.dot(x, wt, preferred_element_type=jnp.float32)
    else:
        tr, c_in = x.shape
        c_out = wt.shape[1]
        xf = x.astype(jnp.float32)
        wtf = wt.astype(jnp.float32)
        y = jnp.zeros((tr, c_out), jnp.float32)
        for ci in range(c_in):
            y = y + xf[:, ci:ci + 1] * wtf[ci:ci + 1, :]
    y = y + b
    y = jnp.maximum(y, negative_slope * y)
    o_ref[...] = y.astype(o_ref.dtype)


def _choose_rm_tiles(R, C_in, C_out, itemsize):
    weight_bytes = C_in * C_out * itemsize
    avail = max(_VMEM_BUDGET - weight_bytes - (1 << 20),
                2 * (C_in + C_out) * 8 * itemsize)
    per_row = 2 * (C_in + C_out) * itemsize
    tr_budget = max(8, (avail // per_row) // 8 * 8)

    if R >= 8:
        tr = min(4096, tr_budget, (R // 8) * 8)
    else:
        tr = R                      # full (tiny) row extent; masked sublanes
    grid_r = pl.cdiv(R, tr)
    if grid_r == 1 and R >= 16:
        # Give both v7x TensorCores a tile.
        tr = _round_up(-(-R // 2), 8)
        grid_r = pl.cdiv(R, tr)
    return tr, grid_r


def _linear_leakyrelu_rm(x2d, weight, bias, *, negative_slope=0.01):
    """Row-major Linear + LeakyReLU.  x2d: [R, C_in] -> [R, C_out]."""
    assert 0.0 <= negative_slope <= 1.0, "max(y, ns*y) needs 0 <= ns <= 1"
    R, C_in = x2d.shape
    C_out = weight.shape[0]
    itemsize = jnp.dtype(x2d.dtype).itemsize

    tr, grid_r = _choose_rm_tiles(R, C_in, C_out, itemsize)
    use_mxu = C_in >= _mxu_cutover_depth()

    # Only the tiny (C_out, C_in) weight is transposed in XLA; the big
    # activation tensor is never transposed outside the kernel.
    wt = weight.T
    bias2d = bias.reshape(1, C_out)

    kernel = functools.partial(_rm_kernel, negative_slope=negative_slope,
                               use_mxu=use_mxu)

    cost = pl.CostEstimate(
        flops=2 * R * C_in * C_out + 3 * R * C_out,
        transcendentals=0,
        bytes_accessed=(R * (C_in + C_out) * itemsize
                        + C_in * C_out * itemsize + C_out * itemsize),
    )

    out = pl.pallas_call(
        kernel,
        out_shape=jax.ShapeDtypeStruct((R, C_out), x2d.dtype),
        grid_spec=pltpu.PrefetchScalarGridSpec(
            num_scalar_prefetch=0,
            grid=(grid_r,),
            in_specs=[
                pl.BlockSpec((tr, C_in), lambda r: (r, 0)),
                pl.BlockSpec((C_in, C_out), lambda r: (0, 0),
                             pipeline_mode=pl.Buffered(1)),
                pl.BlockSpec((1, C_out), lambda r: (0, 0),
                             pipeline_mode=pl.Buffered(1)),
            ],
            out_specs=pl.BlockSpec((tr, C_out), lambda r: (r, 0)),
        ),
        compiler_params=pltpu.CompilerParams(
            dimension_semantics=("parallel",),
            vmem_limit_bytes=_VMEM_LIMIT),
        cost_estimate=cost,
    )(x2d, wt, bias2d)
    return out


# ----------------------------------------------------------------------------
# Module wrapper
# ----------------------------------------------------------------------------
class LinearPermutate:
    """JAX/Pallas port of the PyTorch LinearPermutate module."""

    def __init__(self, input_channel, output_channel, key=None):
        if key is None:
            key = jax.random.PRNGKey(0)
        kw, kb = jax.random.split(key)
        # Mimics torch.nn.Linear default init: U(-1/sqrt(fan_in), 1/sqrt(fan_in)).
        bound = 1.0 / (input_channel ** 0.5)
        self.weight = jax.random.uniform(
            kw, (output_channel, input_channel), jnp.float32, -bound, bound)
        self.bias = jax.random.uniform(
            kb, (output_channel,), jnp.float32, -bound, bound)

    def __call__(self, x):
        c_out = self.weight.shape[0]
        if x.ndim == 4:
            # NCHW is already channel-major: [N,C,H,W] -> [N,C,H*W] is a free
            # reshape; no NHWC permute needed anywhere.
            n, c, h, w = x.shape
            x3d = x.reshape(n, c, h * w)
            y3d = _linear_leakyrelu_cm(x3d, self.weight, self.bias)
            return y3d.reshape(n, c_out, h, w)
        # Generic last-dim Linear: flatten leading dims, row-major kernel
        # (no activation transposes).
        lead = x.shape[:-1]
        c_in = x.shape[-1]
        x2d = x.reshape(-1, c_in)
        y2d = _linear_leakyrelu_rm(x2d, self.weight, self.bias)
        return y2d.reshape(*lead, c_out)


# ----------------------------------------------------------------------------
# Reference + tests
# ----------------------------------------------------------------------------
def _reference(x, weight, bias, negative_slope=0.01):
    if x.ndim == 4:
        xp = jnp.transpose(x, (0, 2, 3, 1))
        y = xp @ weight.T + bias
        y = jnp.where(y > 0, y, negative_slope * y)
        return jnp.transpose(y, (0, 3, 1, 2))
    y = x @ weight.T + bias
    return jnp.where(y > 0, y, negative_slope * y)


if __name__ == "__main__":
    key = jax.random.PRNGKey(0)
    k_x, k_x2, k_x3, k_x4, k_mod = jax.random.split(key, 5)

    input_channel, output_channel = 4, 8
    mod = LinearPermutate(input_channel, output_channel, key=k_mod)

    # 1) Primary 4D shape (NCHW).
    x = jax.random.normal(k_x, (2, input_channel, 16, 16), jnp.float32)
    out = mod(x)
    jax.block_until_ready(out)
    assert out.shape == (2, output_channel, 16, 16), out.shape
    ref = _reference(x, mod.weight, mod.bias)
    assert jnp.allclose(out, ref, atol=1e-5, rtol=1e-5), "mismatch (4D)"

    # 2) 4D with ragged spatial tail (H*W = 130, not a multiple of 128/tm).
    xr = jax.random.normal(k_x2, (2, input_channel, 10, 13), jnp.float32)
    outr = mod(xr)
    jax.block_until_ready(outr)
    refr = _reference(xr, mod.weight, mod.bias)
    assert jnp.allclose(outr, refr, atol=1e-5, rtol=1e-5), "mismatch (ragged 4D)"

    # 3) 2D branch.
    x2 = jax.random.normal(k_x3, (8, input_channel), jnp.float32)
    out2 = mod(x2)
    jax.block_until_ready(out2)
    ref2 = _reference(x2, mod.weight, mod.bias)
    assert jnp.allclose(out2, ref2, atol=1e-5, rtol=1e-5), "mismatch (2D)"

    # 4) 3D branch with a ragged row tail (21 rows, not a multiple of 8).
    x3 = jax.random.normal(k_x4, (3, 7, input_channel), jnp.float32)
    out3 = mod(x3)
    jax.block_until_ready(out3)
    ref3 = _reference(x3, mod.weight, mod.bias)
    assert out3.shape == (3, 7, output_channel), out3.shape
    assert jnp.allclose(out3, ref3, atol=1e-5, rtol=1e-5), "mismatch (3D)"

    print("KERNEL_OK")
</pallas_src>

<mosaic_0001>
module attributes {stable_mosaic.version = 11 : i64} {
  func.func @_cm_kernel(%arg0: i32, %arg1: i32, %arg2: memref<1x4x256xf32, #tpu.memory_space<vmem>>, %arg3: memref<8x4xf32, #tpu.memory_space<vmem>>, %arg4: memref<8x1xf32, #tpu.memory_space<vmem>>, %arg5: memref<1x8x256xf32, #tpu.memory_space<vmem>>) attributes {dimension_semantics = [#tpu.dimension_semantics<parallel>, #tpu.dimension_semantics<parallel>], iteration_bounds = array<i64: 2, 1>, scalar_prefetch = 0 : i64, scratch_operands = 0 : i64, tpu.core_type = #tpu.core_type<tc>, window_params = [{transform_indices = @transform_0, window_bounds = array<i64: 1, 4, 256>}, {pipeline_mode = #tpu.pipeline_mode<synchronous>, transform_indices = @transform_1, window_bounds = array<i64: 8, 4>}, {pipeline_mode = #tpu.pipeline_mode<synchronous>, transform_indices = @transform_2, window_bounds = array<i64: 8, 1>}, {transform_indices = @transform_3, window_bounds = array<i64: 1, 8, 256>}]} {
    %c0 = arith.constant 0 : index
    %c0_0 = arith.constant 0 : index
    %0 = vector.load %arg3[%c0, %c0_0] : memref<8x4xf32, #tpu.memory_space<vmem>>, vector<8x4xf32>
    %c0_1 = arith.constant 0 : index
    %c0_2 = arith.constant 0 : index
    %1 = vector.load %arg4[%c0_1, %c0_2] : memref<8x1xf32, #tpu.memory_space<vmem>>, vector<8x1xf32>
    %2 = vector.extract_strided_slice %0 {offsets = [0, 0], sizes = [8, 1], strides = [1, 1]} : vector<8x4xf32> to vector<8x1xf32>
    %3 = vector.extract_strided_slice %0 {offsets = [0, 1], sizes = [8, 1], strides = [1, 1]} : vector<8x4xf32> to vector<8x1xf32>
    %4 = vector.extract_strided_slice %0 {offsets = [0, 2], sizes = [8, 1], strides = [1, 1]} : vector<8x4xf32> to vector<8x1xf32>
    %5 = vector.extract_strided_slice %0 {offsets = [0, 3], sizes = [8, 1], strides = [1, 1]} : vector<8x4xf32> to vector<8x1xf32>
    %c0_3 = arith.constant 0 : index
    %c0_4 = arith.constant 0 : index
    %c0_5 = arith.constant 0 : index
    %6 = vector.load %arg2[%c0_3, %c0_4, %c0_5] : memref<1x4x256xf32, #tpu.memory_space<vmem>>, vector<1x4x256xf32>
    %7 = vector.shape_cast %6 : vector<1x4x256xf32> to vector<4x256xf32>
    %cst = arith.constant 0.000000e+00 : f32
    %8 = vector.broadcast %cst : f32 to vector<8x256xf32>
    %9 = vector.extract_strided_slice %7 {offsets = [0, 0], sizes = [1, 256], strides = [1, 1]} : vector<4x256xf32> to vector<1x256xf32>
    %10 = vector.broadcast %2 : vector<8x1xf32> to vector<8x256xf32>
    %11 = vector.broadcast %9 : vector<1x256xf32> to vector<8x256xf32>
    %12 = arith.mulf %10, %11 : vector<8x256xf32>
    %13 = arith.addf %8, %12 : vector<8x256xf32>
    %14 = vector.extract_strided_slice %7 {offsets = [1, 0], sizes = [1, 256], strides = [1, 1]} : vector<4x256xf32> to vector<1x256xf32>
    %15 = vector.broadcast %3 : vector<8x1xf32> to vector<8x256xf32>
    %16 = vector.broadcast %14 : vector<1x256xf32> to vector<8x256xf32>
    %17 = arith.mulf %15, %16 : vector<8x256xf32>
    %18 = arith.addf %13, %17 : vector<8x256xf32>
    %19 = vector.extract_strided_slice %7 {offsets = [2, 0], sizes = [1, 256], strides = [1, 1]} : vector<4x256xf32> to vector<1x256xf32>
    %20 = vector.broadcast %4 : vector<8x1xf32> to vector<8x256xf32>
    %21 = vector.broadcast %19 : vector<1x256xf32> to vector<8x256xf32>
    %22 = arith.mulf %20, %21 : vector<8x256xf32>
    %23 = arith.addf %18, %22 : vector<8x256xf32>
    %24 = vector.extract_strided_slice %7 {offsets = [3, 0], sizes = [1, 256], strides = [1, 1]} : vector<4x256xf32> to vector<1x256xf32>
    %25 = vector.broadcast %5 : vector<8x1xf32> to vector<8x256xf32>
    %26 = vector.broadcast %24 : vector<1x256xf32> to vector<8x256xf32>
    %27 = arith.mulf %25, %26 : vector<8x256xf32>
    %28 = arith.addf %23, %27 : vector<8x256xf32>
    %29 = vector.broadcast %1 : vector<8x1xf32> to vector<8x256xf32>
    %30 = arith.addf %28, %29 : vector<8x256xf32>
    %cst_6 = arith.constant 0.00999999977 : f32
    %31 = vector.broadcast %cst_6 : f32 to vector<8x256xf32>
    %32 = arith.mulf %31, %30 : vector<8x256xf32>
    %33 = arith.maximumf %30, %32 : vector<8x256xf32>
    %c0_7 = arith.constant 0 : index
    %c0_8 = arith.constant 0 : index
    %c0_9 = arith.constant 0 : index
    %34 = vector.load %arg5[%c0_7, %c0_8, %c0_9] : memref<1x8x256xf32, #tpu.memory_space<vmem>>, vector<1x8x256xf32>
    %35 = vector.shape_cast %34 : vector<1x8x256xf32> to vector<8x256xf32>
    %36 = vector.shape_cast %33 : vector<8x256xf32> to vector<1x8x256xf32>
    tpu.vector_store %arg5[%c0_7, %c0_8, %c0_9], %36 {strides = array<i32>} : memref<1x8x256xf32, #tpu.memory_space<vmem>>, vector<1x8x256xf32>,
    return
  }
  func.func @transform_0(%arg0: i32, %arg1: i32) -> (i32, i32, i32) {
    %c0_i32 = arith.constant 0 : i32
    %c0_i32_0 = arith.constant 0 : i32
    return %arg0, %c0_i32, %arg1 : i32, i32, i32
  }
  func.func @transform_1(%arg0: i32, %arg1: i32) -> (i32, i32) {
    %c0_i32 = arith.constant 0 : i32
    %c0_i32_0 = arith.constant 0 : i32
    %c0_i32_1 = arith.constant 0 : i32
    return %c0_i32, %c0_i32_0 : i32, i32
  }
  func.func @transform_2(%arg0: i32, %arg1: i32) -> (i32, i32) {
    %c0_i32 = arith.constant 0 : i32
    %c0_i32_0 = arith.constant 0 : i32
    %c0_i32_1 = arith.constant 0 : i32
    return %c0_i32, %c0_i32_0 : i32, i32
  }
  func.func @transform_3(%arg0: i32, %arg1: i32) -> (i32, i32, i32) {
    %c0_i32 = arith.constant 0 : i32
    %c0_i32_0 = arith.constant 0 : i32
    return %arg0, %c0_i32, %arg1 : i32, i32, i32
  }
}

</mosaic_0001>

<llo_original>
// kernel: tpu_custom_call.1
$region0: #{tpu_custom_call.1}
  #allocation0 [shape = 'u32[]', space=smem, size = 0x4, offset = 0x4, fixed_abs, tag = 'smem constant byte address 0x4 - core index']
  #allocation1 [shape = 'u32[144,128]{1,0:T(1,128)}', space=vmem, size = 0x12000, scoped, tag = 'internal scratch']
  %s0 = inlined_call_operand.vmem [shape: f32[2,4,256], index: 0, kind: input, shape index: {}]
  %s1 = inlined_call_operand.vmem [shape: f32[8,4], index: 1, kind: input, shape index: {}]
  %s2 = inlined_call_operand.vmem [shape: f32[8,1], index: 2, kind: input, shape index: {}]
  %s3 = inlined_call_operand.hbm [shape: f32[2,8,256], index: 3, kind: output, shape index: {}]
  %s4 = sld [smem:[#allocation0]]
  $region45: #{tpu_custom_call.1} parent=0
    _
  %s6 = ssub.s32 1, %s4
  %s7 = scalar_select 0, %s6, %s4
  $region1: #{tpu_custom_call.1} parent=0
    #allocation2 [shape = 'u8[16384]{0}', space=vmem, size = 0x4000, scoped, tag = 'output window, operand 0']
    #allocation3 [shape = 's32[2]{0}', space=sflag, size = 0x8, scoped, tag = 'scoped memory for tpu_custom_call.1']
    %8 = vsyncpa [#allocation3], 0
    %s9 = scalar_lea.sflag [#allocation3], 1
    %10 = vsyncpa %s9, 0
    loop: start=0, step=1, limit=4
    $region2: #{tpu_custom_call.1} parent=1 // loop_pre_header
      _
    $region3: #{tpu_custom_call.1} parent=1 // loop_header
      %s12 = sphi 0, %s16
      %p13 = scmp.ge.s32.totalorder %s12, 4
      %s19 = sphi 0, %s31
      %s20 = sphi 0, %s27
      %s21 = sphi 0, %s19
      %s22 = sphi 0, %s20
      %s23 = sphi 0, %s21
      %s24 = sphi 0, %s22
      %s36 = sphi 0, %s38
      %s39 = sphi 0, %s36
      %s40 = sphi 0, %s39
      %s56 = sphi 0, %s40
      %s60 = sphi 0, %s60
      %s62 = sphi 0, %s60
      %s63 = sphi 0, %s62
      %s77 = sphi 0, %s63
      %s81 = sphi 0, %s81
      %s83 = sphi 0, %s81
      %s84 = sphi 0, %s83
      %s98 = sphi 0, %s84
      %s106 = sphi 0, %s108
      %s109 = sphi 0, %s106
      %s110 = sphi 0, %s109
      %s126 = sphi 0, %s110
    $region4: #{tpu_custom_call.1} parent=1 // loop_header_branch
      %15 = sbr.rel (%p13) target = $region8
    $region5: #{tpu_custom_call.1} parent=1 // loop_body
      %s17 = ssub.s32 %s12, 1
      %s18 = ssub.s32 %s12, 2
      %s25 = sadd.s32 1, %s20
      %p26 = scmp.ge.s32.totalorder %s25, 1
      %s27 = scalar_select %p26, 0, %s25
      %s28 = sadd.s32 1, %s19
      %s29 = scalar_select %p26, %s28, %s19
      %p30 = scmp.ge.s32.totalorder %s29, 2
      %s31 = scalar_select %p30, 0, %s29
      %s32 = ssub.s32 %s19, %s31
      %s33 = ssub.s32 %s20, %s27
      %s34 = sor.u32 %s32, %s33
      %p35 = scmp.eq.s32.totalorder %s34, 0
      %s37 = sadd.s32 %s36, 1
      %s38 = scalar_select %p35, %s36, %s37
      %p41 = pneg %p35
      %p42 = scmp.eq.s32.totalorder %s12, 1
      %p43 = por %p41, %p42
      %p44 = scmp.ne.s32.totalorder %s36, %s39
      %p45 = scmp.eq.s32.totalorder %s12, 0
      %p46 = por %p44, %p45
      %p47 = scmp.ne.s32.totalorder %s36, %s39
      %p48 = scmp.eq.s32.totalorder %s17, 1
      %p49 = por %p47, %p48
      %p50 = scmp.ne.s32.totalorder %s39, %s40
      %p51 = scmp.eq.s32.totalorder %s17, 0
      %p52 = por %p50, %p51
      %p53 = scmp.ne.s32.totalorder %s39, %s40
      %p54 = scmp.eq.s32.totalorder %s18, 1
      %p55 = por %p53, %p54
      %p57 = scmp.ne.s32.totalorder %s40, %s56
      %p58 = scmp.eq.s32.totalorder %s18, 0
      %p59 = por %p57, %p58
      %s61 = sadd.s32 %s60, 1
      %p64 = scmp.eq.s32.totalorder %s12, 1
      %p65 = scmp.ne.s32.totalorder %s60, %s62
      %p66 = scmp.eq.s32.totalorder %s12, 0
      %p67 = por %p65, %p66
      %p68 = scmp.ne.s32.totalorder %s60, %s62
      %p69 = scmp.eq.s32.totalorder %s17, 1
      %p70 = por %p68, %p69
      %p71 = scmp.ne.s32.totalorder %s62, %s63
      %p72 = scmp.eq.s32.totalorder %s17, 0
      %p73 = por %p71, %p72
      %p74 = scmp.ne.s32.totalorder %s62, %s63
      %p75 = scmp.eq.s32.totalorder %s18, 1
      %p76 = por %p74, %p75
      %p78 = scmp.ne.s32.totalorder %s63, %s77
      %p79 = scmp.eq.s32.totalorder %s18, 0
      %p80 = por %p78, %p79
      %s82 = sadd.s32 %s81, 1
      %p85 = scmp.eq.s32.totalorder %s12, 1
      %p86 = scmp.ne.s32.totalorder %s81, %s83
      %p87 = scmp.eq.s32.totalorder %s12, 0
      %p88 = por %p86, %p87
      %p89 = scmp.ne.s32.totalorder %s81, %s83
      %p90 = scmp.eq.s32.totalorder %s17, 1
      %p91 = por %p89, %p90
      %p92 = scmp.ne.s32.totalorder %s83, %s84
      %p93 = scmp.eq.s32.totalorder %s17, 0
      %p94 = por %p92, %p93
      %p95 = scmp.ne.s32.totalorder %s83, %s84
      %p96 = scmp.eq.s32.totalorder %s18, 1
      %p97 = por %p95, %p96
      %p99 = scmp.ne.s32.totalorder %s84, %s98
      %p100 = scmp.eq.s32.totalorder %s18, 0
      %p101 = por %p99, %p100
      %s102 = ssub.s32 %s19, %s31
      %s103 = ssub.s32 %s20, %s27
      %s104 = sor.u32 %s102, %s103
      %p105 = scmp.eq.s32.totalorder %s104, 0
      %s107 = sadd.s32 %s106, 1
      %s108 = scalar_select %p105, %s106, %s107
      %p111 = pneg %p105
      %p112 = scmp.eq.s32.totalorder %s12, 1
      %p113 = por %p111, %p112
      %p114 = scmp.ne.s32.totalorder %s106, %s109
      %p115 = scmp.eq.s32.totalorder %s12, 0
      %p116 = por %p114, %p115
      %p117 = scmp.ne.s32.totalorder %s106, %s109
      %p118 = scmp.eq.s32.totalorder %s17, 1
      %p119 = por %p117, %p118
      %p120 = scmp.ne.s32.totalorder %s109, %s110
      %p121 = scmp.eq.s32.totalorder %s17, 0
      %p122 = por %p120, %p121
      %p123 = scmp.ne.s32.totalorder %s109, %s110
      %p124 = scmp.eq.s32.totalorder %s18, 1
      %p125 = por %p123, %p124
      %p127 = scmp.ne.s32.totalorder %s110, %s126
      %p128 = scmp.eq.s32.totalorder %s18, 0
      %p129 = por %p127, %p128
      %p130 = scmp.le.s32.totalorder 1, %s12
      %p131 = scmp.lt.s32.totalorder %s12, 3
      %p132 = pnand %p130, %p131
      %p133 = pneg %p132
      // Predicated region
      $region9: #{tpu_custom_call.1} parent=5 // pred_check
        _
      $region10: #{tpu_custom_call.1} parent=5 // pred_check_branch
        %135 = sbr.rel (%p132) target = $region12
      $region11: #{tpu_custom_call.1} parent=5 // pred_region
        %s136 = ssub.s32 %s12, 1
        // Predicated region
        $region13: #{tpu_custom_call.1} parent=11 // pred_check
          %p137 = pneg %p73
        $region14: #{tpu_custom_call.1} parent=11 // pred_check_branch
          %139 = sbr.rel (%p137) target = $region16
        $region15: #{tpu_custom_call.1} parent=11 // pred_region
          _
        $region16: #{tpu_custom_call.1} parent=11 // pred_fallthru
          _
        // Predicated region
        $region17: #{tpu_custom_call.1} parent=11 // pred_check
          %p140 = pneg %p94
        $region18: #{tpu_custom_call.1} parent=11 // pred_check_branch
          %142 = sbr.rel (%p140) target = $region20
        $region19: #{tpu_custom_call.1} parent=11 // pred_region
          _
        $region20: #{tpu_custom_call.1} parent=11 // pred_fallthru
          _
      $region12: #{tpu_custom_call.1} parent=5 // pred_fallthru
        _
      %p143 = scmp.lt.s32.totalorder %s12, 2
      // Predicated region
      $region21: #{tpu_custom_call.1} parent=5 // pred_check
        %p144 = pneg %p143
      $region22: #{tpu_custom_call.1} parent=5 // pred_check_branch
        %146 = sbr.rel (%p144) target = $region24
      $region23: #{tpu_custom_call.1} parent=5 // pred_region
        // Predicated region
        $region25: #{tpu_custom_call.1} parent=23 // pred_check
          %p147 = pneg %p46
        $region26: #{tpu_custom_call.1} parent=23 // pred_check_branch
          %149 = sbr.rel (%p147) target = $region28
        $region27: #{tpu_custom_call.1} parent=23 // pred_region
          %s150 = smul.u32 2, %s20
          %p151 = scmp.lt.s32.totalorder %s19, 1
          %s152 = scalar_select %p151, %s19, 1
          %p153 = scmp.lt.s32.totalorder %s150, 1
          %s154 = scalar_select %p153, %s150, 1
          %s155 = smul.addr %s152, 2
          %s156 = sadd.s32 %s154, %s155
          %s157 = smul.addr %s156, 4
          %s158 = scalar_lea.vmem %s0, %s157
          %s159 = smul.u32 2, %s20
        $region28: #{tpu_custom_call.1} parent=23 // pred_fallthru
          _
      $region24: #{tpu_custom_call.1} parent=5 // pred_fallthru
        _
      %p160 = scmp.le.s32.totalorder 1, %s12
      %p161 = scmp.lt.s32.totalorder %s12, 3
      %p162 = pnand %p160, %p161
      %p163 = pneg %p162
      // Predicated region
      $region29: #{tpu_custom_call.1} parent=5 // pred_check
        _
      $region30: #{tpu_custom_call.1} parent=5 // pred_check_branch
        %165 = sbr.rel (%p162) target = $region32
      $region31: #{tpu_custom_call.1} parent=5 // pred_region
        %s166 = ssub.s32 %s12, 1
        %s167 = smul.u32 2, %s22
        %p168 = scmp.lt.s32.totalorder %s21, 1
        %s169 = scalar_select %p168, %s21, 1
        %p170 = scmp.lt.s32.totalorder %s167, 1
        %s171 = scalar_select %p170, %s167, 1
        %s172 = smul.addr %s169, 2
        %s173 = sadd.s32 %s171, %s172
        %s174 = smul.addr %s173, 4
        %s175 = scalar_lea.vmem %s0, %s174
        %p176 = pneg %p52
        %p177 = pneg %p49
        %p178 = pneg %p73
        %p179 = pneg %p70
        %p180 = pneg %p94
        %p181 = pneg %p91
        %p182 = pneg %p122
        %p183 = pneg %p119
        %s184 = sand.u32 %s109, 1
        %s185 = scalar_lea.sflag [#allocation3], %s184
        %s186 = sand.u32 %s109, 1
        %s187 = smul.addr %s186, 16
        %s188 = scalar_lea.vmem [#allocation2], %s187
        %s189 = smul.u32 2, %s22
        %p190 = scmp.lt.s32.totalorder %s21, 1
        %s191 = scalar_select %p190, %s21, 1
        %p192 = scmp.lt.s32.totalorder %s189, 1
        %s193 = scalar_select %p192, %s189, 1
        %s194 = smul.addr %s191, 2
        %s195 = sadd.s32 %s193, %s194
        %s196 = smul.addr %s195, 4
        %s197 = scalar_lea.vmem %s0, %s196
        %s198 = smul.u32 2, %s22
        %s199 = smul.u32 2, %s22
        %v200 = vld [vmem:[%s1] sm:$0xff]
        %v201 = vld [vmem:[%s2] sm:$0xff]
        %v202 = vld [vmem:[%s197] sm:$0xff]
        %204 = vset.pattern.permute.xlu0 0
        %205 = vperm.xlu0 %204, %v200
        %v206 = vpop.permute.xlu0 %205
        %v209 = vlaneseq
        %v210 = vshrl.u32 %v209, 7
        %v211 = vsub.s32 0, %v210
        %v212 = vrot.slane %v202, %v211
        %v213 = vlaneseq
        %v214 = vshrl.u32 %v213, 7
        %v215 = vsub.s32 4, %v214
        %v216 = vrot.slane %v202, %v215
        %v219 = vlaneseq
        %v220 = vshrl.u32 %v219, 7
        %v221 = vsub.s32 0, %v220
        %v222 = vrot.slane %v212, %v221
        %v223 = vlaneseq
        %v224 = vshrl.u32 %v223, 7
        %v225 = vsub.s32 0, %v224
        %v226 = vrot.slane %v216, %v225
        %v227 = vmul.f32 %v206, %v222
        %v228 = vmul.f32 %v206, %v226
        %v229 = vadd.f32 %v227, 0.0
        %v230 = vadd.f32 %v228, 0.0
        %231 = vset.pattern.permute.xlu0 1
        %232 = vperm.xlu0 %231, %v200
        %v233 = vpop.permute.xlu0 %232
        %v235 = vlaneseq
        %v236 = vshrl.u32 %v235, 7
        %v237 = vsub.s32 1, %v236
        %v238 = vrot.slane %v202, %v237
        %v239 = vlaneseq
        %v240 = vshrl.u32 %v239, 7
        %v241 = vsub.s32 5, %v240
        %v242 = vrot.slane %v202, %v241
        %v245 = vlaneseq
        %v246 = vshrl.u32 %v245, 7
        %v247 = vsub.s32 1, %v246
        %v248 = vrot.slane %v238, %v247
        %v249 = vlaneseq
        %v250 = vshrl.u32 %v249, 7
        %v251 = vsub.s32 1, %v250
        %v252 = vrot.slane %v242, %v251
        %v253 = vmul.f32 %v233, %v248
        %v254 = vmul.f32 %v233, %v252
        %v255 = vadd.f32 %v229, %v253
        %v256 = vadd.f32 %v230, %v254
        %257 = vset.pattern.permute.xlu0 2
        %258 = vperm.xlu0 %257, %v200
        %v259 = vpop.permute.xlu0 %258
        %v261 = vlaneseq
        %v262 = vshrl.u32 %v261, 7
        %v263 = vsub.s32 2, %v262
        %v264 = vrot.slane %v202, %v263
        %v265 = vlaneseq
        %v266 = vshrl.u32 %v265, 7
        %v267 = vsub.s32 6, %v266
        %v268 = vrot.slane %v202, %v267
        %v271 = vlaneseq
        %v272 = vshrl.u32 %v271, 7
        %v273 = vsub.s32 2, %v272
        %v274 = vrot.slane %v264, %v273
        %v275 = vlaneseq
        %v276 = vshrl.u32 %v275, 7
        %v277 = vsub.s32 2, %v276
        %v278 = vrot.slane %v268, %v277
        %v279 = vmul.f32 %v259, %v274
        %v280 = vmul.f32 %v259, %v278
        %v281 = vadd.f32 %v255, %v279
        %v282 = vadd.f32 %v256, %v280
        %283 = vset.pattern.permute.xlu0 3
        %284 = vperm.xlu0 %283, %v200
        %v285 = vpop.permute.xlu0 %284
        %v287 = vlaneseq
        %v288 = vshrl.u32 %v287, 7
        %v289 = vsub.s32 3, %v288
        %v290 = vrot.slane %v202, %v289
        %v291 = vlaneseq
        %v292 = vshrl.u32 %v291, 7
        %v293 = vsub.s32 7, %v292
        %v294 = vrot.slane %v202, %v293
        %v297 = vlaneseq
        %v298 = vshrl.u32 %v297, 7
        %v299 = vsub.s32 3, %v298
        %v300 = vrot.slane %v290, %v299
        %v301 = vlaneseq
        %v302 = vshrl.u32 %v301, 7
        %v303 = vsub.s32 3, %v302
        %v304 = vrot.slane %v294, %v303
        %v305 = vmul.f32 %v285, %v300
        %v306 = vmul.f32 %v285, %v304
        %v307 = vadd.f32 %v281, %v305
        %v308 = vadd.f32 %v282, %v306
        %310 = vset.pattern.permute.xlu0 0
        %311 = vperm.xlu0 %310, %v201
        %v312 = vpop.permute.xlu0 %311
        %v314 = vadd.f32 %v307, %v312
        %v315 = vadd.f32 %v308, %v312
        %v316 = vmul.f32 %v314, 0.01
        %v317 = vmul.f32 %v315, 0.01
        %v318 = vmax.f32 %v314, %v316
        %v319 = vmax.f32 %v315, %v317
        %320 = vst [vmem:[%s188] sm:$0xff] %v318
        %321 = vst [vmem:[%s188 + $0x8] sm:$0xff] %v319
        %s322 = sand.u32 %s109, 1
        %s323 = scalar_lea.sflag [#allocation3], %s322
        %s324 = sand.u32 %s109, 1
        %s325 = smul.addr %s324, 16
        %s326 = scalar_lea.vmem [#allocation2], %s325
        // Predicated region
        $region33: #{tpu_custom_call.1} parent=31 // pred_check
          %p327 = pneg %p119
        $region34: #{tpu_custom_call.1} parent=31 // pred_check_branch
          %329 = sbr.rel (%p327) target = $region36
        $region35: #{tpu_custom_call.1} parent=31 // pred_region
          %s330 = smul.u32 2, %s22
          %s332 = ssub.s32 256, 256
          %333 = vsyncadd %s323, %s332
          %s334 = smul.addr %s21, 2
          %s335 = sadd.s32 %s330, %s334
          %s336 = smul.addr %s335, 128
          %s337 = scalar_lea.hbm %s3, %s336
          %s339 = sshll.u32 %s326, 4
          %s340 = int_to_ptr.vmem [resolvable:$true] %s339
          %342 = dma.vmem_to_hbm [thread:$0]  %s340, 256, %s337, %s323
        $region36: #{tpu_custom_call.1} parent=31 // pred_fallthru
          _
      $region32: #{tpu_custom_call.1} parent=5 // pred_fallthru
        _
      %p343 = scmp.le.s32.totalorder 2, %s12
      // Predicated region
      $region37: #{tpu_custom_call.1} parent=5 // pred_check
        %p344 = pneg %p343
      $region38: #{tpu_custom_call.1} parent=5 // pred_check_branch
        %346 = sbr.rel (%p344) target = $region40
      $region39: #{tpu_custom_call.1} parent=5 // pred_region
        %s347 = ssub.s32 %s12, 2
        // Predicated region
        $region41: #{tpu_custom_call.1} parent=39 // pred_check
          %p348 = pneg %p125
        $region42: #{tpu_custom_call.1} parent=39 // pred_check_branch
          %350 = sbr.rel (%p348) target = $region44
        $region43: #{tpu_custom_call.1} parent=39 // pred_region
          %s351 = sand.u32 %s110, 1
          %s352 = scalar_lea.sflag [#allocation3], %s351
          %s353 = sand.u32 %s110, 1
          %s354 = smul.addr %s353, 16
          %s355 = scalar_lea.vmem [#allocation2], %s354
          %356 = dma.done %s352, 256
        $region44: #{tpu_custom_call.1} parent=39 // pred_fallthru
          _
      $region40: #{tpu_custom_call.1} parent=5 // pred_fallthru
        _
    $region6: #{tpu_custom_call.1} parent=1 // loop_footer
      %s16 = sadd.s32 1, %s12
    $region7: #{tpu_custom_call.1} parent=1 // loop_footer_branch
      %11 = sbr.rel target = $region3
    $region8: #{tpu_custom_call.1} parent=1 // loop_exit
      _
    %357 = vsyncpa [#allocation3], 1
    %s358 = scalar_lea.sflag [#allocation3], 1
    %359 = vsyncpa %s358, 1

</llo_original>
